<compile_context>
chip_gen: v7x
topology: tpu7x:2x2x1
jax: 0.10.0
libtpu: 0.0.40
codegen_flags: <defaults>
</compile_context>

<pallas_src>
import numpy as np
import jax
import jax.numpy as jnp
from jax.experimental import pallas as pl
from jax.experimental.pallas import tpu as pltpu

_LANES = 128


def _lrelu(x):
    return jnp.where(x > 0, x, 0.1 * x)


def _sigmoid(x):
    # Numerically stable sigmoid (no overflow for large |x|); exp -> EUP slot.
    e = jnp.exp(-jnp.abs(x))
    return jnp.where(x >= 0, 1.0 / (1.0 + e), e / (1.0 + e))


def _round_up(n, m):
    return ((n + m - 1) // m) * m


# ----------------------------------------------------------------------------
# Host-side folding / packing of parameters into two lane-dense VMEM slabs.
# ----------------------------------------------------------------------------
def _pack_params(p, S, H, M, O):
    f32 = jnp.float32
    H2 = H // 2

    # gate: zero-pad the input rows so the dot consumes the full x row.
    W_gate = jnp.zeros((S + 2, S + 2), f32).at[2:, :].set(p["gate_w"])
    b_gate = p["gate_b"]                                        # (1, S+2)

    # pix/xy embeddings as one block matmul; output = [shape_emb | xy_emb],
    # which is exactly `combined = cat(shape_emb, xy_emb)`.
    W_emb = (jnp.zeros((S + 2, H), f32)
             .at[2:, 0:H2].set(p["pix_w"])
             .at[0:2, H2:H].set(p["xy_w"]))
    b_emb = jnp.concatenate([p["pix_b"], p["xy_b"]], axis=-1)   # (1, H)

    W_joint, b_joint = p["joint_w"], p["joint_b"]

    # RNN cell fused with map_readout (dropout p=0): columns = [map_ | h_new].
    i2o_map_w = p["i2o_w"] @ p["map_w"]                         # (2H, M)
    i2o_map_b = p["i2o_b"] @ p["map_w"] + p["map_b"]            # (1, M)
    W_cell = jnp.concatenate([i2o_map_w, p["i2h_w"]], axis=-1)  # (2H, M+H)
    b_cell = jnp.concatenate([i2o_map_b, p["i2h_b"]], axis=-1)  # (1, M+H)

    weights = [("gate", W_gate), ("emb", W_emb), ("joint", W_joint),
               ("cell", W_cell), ("after", p["after_w"]), ("num", p["num_w"])]
    biases = [b_gate, b_emb, b_joint, b_cell, p["after_b"], p["num_b"]]

    offs, blocks, off = {}, [], 0
    for name, w in weights:
        r, c = w.shape
        offs[name] = off
        rpad = _round_up(r, 8)                      # sublane-aligned blocks
        blocks.append(jnp.zeros((rpad, _LANES), f32).at[:r, :c].set(w))
        off += rpad
    w_slab = jnp.concatenate(blocks, axis=0)        # (rows_total, 128)

    b_slab = jnp.zeros((8, _LANES), f32)            # one vreg of biases
    for i, b in enumerate(biases):
        b_slab = b_slab.at[i, : b.shape[1]].set(b[0])
    return w_slab, b_slab, offs


# ----------------------------------------------------------------------------
# Kernel (built as a closure over the static sizes / slab row offsets).
# ----------------------------------------------------------------------------
def _build_kernel(S, H, M, O, offs):
    r_gate, r_emb, r_joint, r_cell, r_after, r_num = (
        offs[k] for k in ("gate", "emb", "joint", "cell", "after", "num"))
    din = S + 2            # width of x / gated
    dcell = M + H          # fused cell output width  [map_ | h_new]
    used = O + din + dcell
    f32 = jnp.float32

    def kernel(x_ref, h_ref, w_ref, b_ref, out_ref):
        x = x_ref[...]                                       # (Bt, S+2)
        h = h_ref[...]                                       # (Bt, H)

        # 1) gate + gating (zero-padded weight: xy lanes contribute 0)
        gate = _sigmoid(
            jnp.dot(x, w_ref[r_gate:r_gate + din, 0:din],
                    preferred_element_type=f32) + b_ref[0:1, 0:din])
        gated = x * gate                                     # (Bt, S+2)

        # 2) fused pix/xy embedding -> combined = [shape_emb | xy_emb]
        emb = _lrelu(
            jnp.dot(gated, w_ref[r_emb:r_emb + din, 0:H],
                    preferred_element_type=f32) + b_ref[1:2, 0:H])

        # 3) joint embedding
        xj = _lrelu(
            jnp.dot(emb, w_ref[r_joint:r_joint + H, 0:H],
                    preferred_element_type=f32) + b_ref[2:3, 0:H])

        # 4) fused RNN cell + map readout: cell = [map_ | h_new]
        cell = (
            jnp.dot(xj, w_ref[r_cell:r_cell + H, 0:dcell],
                    preferred_element_type=f32)
            + jnp.dot(h, w_ref[r_cell + H:r_cell + 2 * H, 0:dcell],
                      preferred_element_type=f32)
            + b_ref[3:4, 0:dcell])
        map_ = cell[:, 0:M]

        # 5) after_map + num readout
        penult = _lrelu(
            jnp.dot(_sigmoid(map_), w_ref[r_after:r_after + M, 0:M],
                    preferred_element_type=f32) + b_ref[4:5, 0:M])
        num = jnp.dot(penult, w_ref[r_num:r_num + M, 0:O],
                      preferred_element_type=f32) + b_ref[5:6, 0:O]

        # 6) single lane-dense output slab: [num | gated | cell | zeros]
        out_ref[:, 0:O] = num
        out_ref[:, O:O + din] = gated
        out_ref[:, O + din:used] = cell
        out_ref[:, used:] = jnp.zeros((num.shape[0], _LANES - used), f32)

    return kernel


# ----------------------------------------------------------------------------
# Wrapper
# ----------------------------------------------------------------------------
def gated_symbolic_rnn(x, hidden, params, *, b_tile=None):
    """x: (B, 2+sh_size), hidden: (B, H). Returns (num, shape, map_, hidden')."""
    x = x.astype(jnp.float32)
    hidden = hidden.astype(jnp.float32)
    B = x.shape[0]
    S = x.shape[1] - 2
    H = hidden.shape[1]
    M = params["map_w"].shape[1]
    O = params["num_w"].shape[1]

    w_slab, b_slab, offs = _pack_params(params, S, H, M, O)

    # Batch tiling: fills the f32 sublane dim; for larger B the grid shards
    # "parallel" across v7x's 2 TensorCores (no-op on v5e/v6e).
    if b_tile is None:
        b_tile = min(_round_up(B, 8), 256)
    Bp = _round_up(B, b_tile)
    if Bp != B:
        x = jnp.pad(x, ((0, Bp - B), (0, 0)))
        hidden = jnp.pad(hidden, ((0, Bp - B), (0, 0)))

    kernel = _build_kernel(S, H, M, O, offs)
    grid = (Bp // b_tile,)

    din, dcell = S + 2, M + H
    flops = 2 * Bp * (din * din + din * H + H * H + 2 * H * dcell + M * M + M * O)
    transcendentals = Bp * (din + M)
    bytes_accessed = 4 * (x.size + hidden.size + w_slab.size + b_slab.size
                          + Bp * _LANES)

    out = pl.pallas_call(
        kernel,
        out_shape=jax.ShapeDtypeStruct((Bp, _LANES), jnp.float32),
        grid_spec=pltpu.PrefetchScalarGridSpec(
            num_scalar_prefetch=0,
            grid=grid,
            in_specs=[
                pl.BlockSpec((b_tile, S + 2), lambda i: (i, 0)),
                pl.BlockSpec((b_tile, H), lambda i: (i, 0)),
                pl.BlockSpec(w_slab.shape, lambda i: (0, 0)),   # resident slab
                pl.BlockSpec(b_slab.shape, lambda i: (0, 0)),   # resident slab
            ],
            out_specs=pl.BlockSpec((b_tile, _LANES), lambda i: (i, 0)),
        ),
        compiler_params=pltpu.CompilerParams(
            dimension_semantics=("parallel",)),
        cost_estimate=pl.CostEstimate(
            flops=int(flops),
            transcendentals=int(transcendentals),
            bytes_accessed=int(bytes_accessed)),
    )(x, hidden, w_slab, b_slab)

    num = out[:B, 0:O]
    shape = out[:B, O + 2:O + 2 + S]           # shape part of gated
    map_ = out[:B, O + din:O + din + M]
    h_new = out[:B, O + din + M:O + din + M + H]
    return num, shape, map_, h_new


# ----------------------------------------------------------------------------
# Synthetic params + pure-JAX reference (unfused) for verification.
# ----------------------------------------------------------------------------
def make_params(key, sh_size, hidden_size, map_size, output_size):
    """Deterministic synthetic parameters; weights stored as (in, out)."""
    H = hidden_size
    H2 = H // 2
    shapes = {
        "gate_w": (sh_size, sh_size + 2), "gate_b": (1, sh_size + 2),
        "pix_w": (sh_size, H2),           "pix_b": (1, H2),
        "xy_w": (2, H2),                  "xy_b": (1, H2),
        "joint_w": (H, H),                "joint_b": (1, H),
        "i2h_w": (2 * H, H),              "i2h_b": (1, H),
        "i2o_w": (2 * H, H),              "i2o_b": (1, H),
        "map_w": (H, map_size),           "map_b": (1, map_size),
        "after_w": (map_size, map_size),  "after_b": (1, map_size),
        "num_w": (map_size, output_size), "num_b": (1, output_size),
    }
    params = {}
    keys = jax.random.split(key, len(shapes))
    for k, (name, shp) in zip(keys, sorted(shapes.items())):
        scale = 1.0 / np.sqrt(max(shp[0], 1))
        params[name] = (scale * jax.random.normal(k, shp)).astype(jnp.float32)
    return params


def reference_forward(x, hidden, p):
    """Pure-JAX reference replicating the PyTorch forward (no fusion)."""
    shape_in = x[:, 2:]
    gate = jax.nn.sigmoid(shape_in @ p["gate_w"] + p["gate_b"])
    gated = x * gate
    xy, shape = gated[:, :2], gated[:, 2:]
    shape_emb = _lrelu(shape @ p["pix_w"] + p["pix_b"])
    xy_emb = _lrelu(xy @ p["xy_w"] + p["xy_b"])
    combined = jnp.concatenate([shape_emb, xy_emb], axis=-1)
    xj = _lrelu(combined @ p["joint_w"] + p["joint_b"])
    comb2 = jnp.concatenate([xj, hidden], axis=-1)
    h_new = comb2 @ p["i2h_w"] + p["i2h_b"]
    out = comb2 @ p["i2o_w"] + p["i2o_b"]
    map_ = out @ p["map_w"] + p["map_b"]
    sig = jax.nn.sigmoid(map_)
    penult = _lrelu(sig @ p["after_w"] + p["after_b"])
    num = penult @ p["num_w"] + p["num_b"]
    return num, shape, map_, h_new


if __name__ == "__main__":
    B, sh_size, hidden_size, map_size, output_size = 8, 9, 32, 16, 8

    key = jax.random.PRNGKey(0)
    kx, kh, kp = jax.random.split(key, 3)
    x = jax.random.normal(kx, (B, 2 + sh_size), dtype=jnp.float32)
    hidden = jax.random.normal(kh, (B, hidden_size), dtype=jnp.float32)
    params = make_params(kp, sh_size, hidden_size, map_size, output_size)

    outs = jax.block_until_ready(gated_symbolic_rnn(x, hidden, params))

    refs = reference_forward(x, hidden, params)
    for o, r in zip(outs, refs):
        # map_readout fold re-associates one matmul chain -> allow small slack.
        np.testing.assert_allclose(np.asarray(o), np.asarray(r),
                                   rtol=1e-4, atol=1e-4)

    print("KERNEL_OK")
</pallas_src>

<mosaic_0001>
module attributes {stable_mosaic.version = 11 : i64} {
  func.func @kernel(%arg0: i32, %arg1: memref<8x11xf32, #tpu.memory_space<vmem>>, %arg2: memref<8x32xf32, #tpu.memory_space<vmem>>, %arg3: memref<160x128xf32, #tpu.memory_space<vmem>>, %arg4: memref<8x128xf32, #tpu.memory_space<vmem>>, %arg5: memref<8x128xf32, #tpu.memory_space<vmem>>) attributes {dimension_semantics = [#tpu.dimension_semantics<parallel>], iteration_bounds = array<i64: 1>, scalar_prefetch = 0 : i64, scratch_operands = 0 : i64, tpu.core_type = #tpu.core_type<tc>, window_params = [{transform_indices = @transform_0, window_bounds = array<i64: 8, 11>}, {transform_indices = @transform_1, window_bounds = array<i64: 8, 32>}, {pipeline_mode = #tpu.pipeline_mode<synchronous>, transform_indices = @transform_2, window_bounds = array<i64: 160, 128>}, {pipeline_mode = #tpu.pipeline_mode<synchronous>, transform_indices = @transform_3, window_bounds = array<i64: 8, 128>}, {transform_indices = @transform_4, window_bounds = array<i64: 8, 128>}]} {
    %c0 = arith.constant 0 : index
    %c0_0 = arith.constant 0 : index
    %0 = vector.load %arg1[%c0, %c0_0] : memref<8x11xf32, #tpu.memory_space<vmem>>, vector<8x11xf32>
    %c0_1 = arith.constant 0 : index
    %c0_2 = arith.constant 0 : index
    %1 = vector.load %arg2[%c0_1, %c0_2] : memref<8x32xf32, #tpu.memory_space<vmem>>, vector<8x32xf32>
    %c0_3 = arith.constant 0 : index
    %c0_4 = arith.constant 0 : index
    %2 = vector.load %arg3[%c0_3, %c0_4] : memref<160x128xf32, #tpu.memory_space<vmem>>, vector<11x11xf32>
    %cst = arith.constant dense<0.000000e+00> : vector<8x11xf32>
    %3 = tpu.matmul %0, %2, %cst {dimension_numbers = #tpu.dot_dimension_numbers<[1], [0], [0], [1], [0, 0, 1, 1], [], []>} : vector<8x11xf32>, vector<11x11xf32>, vector<8x11xf32> -> vector<8x11xf32>
    %c0_5 = arith.constant 0 : index
    %c0_6 = arith.constant 0 : index
    %4 = vector.load %arg4[%c0_5, %c0_6] : memref<8x128xf32, #tpu.memory_space<vmem>>, vector<1x11xf32>
    %5 = vector.broadcast %4 : vector<1x11xf32> to vector<8x11xf32>
    %6 = arith.addf %3, %5 : vector<8x11xf32>
    %7 = math.absf %6 : vector<8x11xf32>
    %cst_7 = arith.constant 0.000000e+00 : f32
    %8 = vector.broadcast %cst_7 : f32 to vector<8x11xf32>
    %9 = arith.subf %8, %7 : vector<8x11xf32>
    %10 = math.exp %9 : vector<8x11xf32>
    %cst_8 = arith.constant 0.000000e+00 : f32
    %11 = vector.broadcast %cst_8 : f32 to vector<8x11xf32>
    %12 = arith.cmpf oge, %6, %11 : vector<8x11xf32>
    %cst_9 = arith.constant 1.000000e+00 : f32
    %13 = vector.broadcast %cst_9 : f32 to vector<8x11xf32>
    %14 = arith.addf %13, %10 : vector<8x11xf32>
    %cst_10 = arith.constant 1.000000e+00 : f32
    %15 = vector.broadcast %cst_10 : f32 to vector<8x11xf32>
    %16 = arith.divf %15, %14 : vector<8x11xf32>
    %cst_11 = arith.constant 1.000000e+00 : f32
    %17 = vector.broadcast %cst_11 : f32 to vector<8x11xf32>
    %18 = arith.addf %17, %10 : vector<8x11xf32>
    %19 = arith.divf %10, %18 : vector<8x11xf32>
    %20 = arith.select %12, %16, %19 : vector<8x11xi1>, vector<8x11xf32>
    %21 = arith.mulf %0, %20 : vector<8x11xf32>
    %c16 = arith.constant 16 : index
    %c0_12 = arith.constant 0 : index
    %22 = vector.load %arg3[%c16, %c0_12] : memref<160x128xf32, #tpu.memory_space<vmem>>, vector<11x32xf32>
    %cst_13 = arith.constant dense<0.000000e+00> : vector<8x32xf32>
    %23 = tpu.matmul %21, %22, %cst_13 {dimension_numbers = #tpu.dot_dimension_numbers<[1], [0], [0], [1], [0, 0, 1, 1], [], []>} : vector<8x11xf32>, vector<11x32xf32>, vector<8x32xf32> -> vector<8x32xf32>
    %c1 = arith.constant 1 : index
    %c0_14 = arith.constant 0 : index
    %24 = vector.load %arg4[%c1, %c0_14] : memref<8x128xf32, #tpu.memory_space<vmem>>, vector<1x32xf32>
    %25 = vector.broadcast %24 : vector<1x32xf32> to vector<8x32xf32>
    %26 = arith.addf %23, %25 : vector<8x32xf32>
    %cst_15 = arith.constant 0.000000e+00 : f32
    %27 = vector.broadcast %cst_15 : f32 to vector<8x32xf32>
    %28 = arith.cmpf ogt, %26, %27 : vector<8x32xf32>
    %cst_16 = arith.constant 1.000000e-01 : f32
    %29 = vector.broadcast %cst_16 : f32 to vector<8x32xf32>
    %30 = arith.mulf %29, %26 : vector<8x32xf32>
    %31 = arith.select %28, %26, %30 : vector<8x32xi1>, vector<8x32xf32>
    %c32 = arith.constant 32 : index
    %c0_17 = arith.constant 0 : index
    %32 = vector.load %arg3[%c32, %c0_17] : memref<160x128xf32, #tpu.memory_space<vmem>>, vector<32x32xf32>
    %cst_18 = arith.constant dense<0.000000e+00> : vector<8x32xf32>
    %33 = tpu.matmul %31, %32, %cst_18 {dimension_numbers = #tpu.dot_dimension_numbers<[1], [0], [0], [1], [0, 0, 1, 1], [], []>} : vector<8x32xf32>, vector<32x32xf32>, vector<8x32xf32> -> vector<8x32xf32>
    %c2 = arith.constant 2 : index
    %c0_19 = arith.constant 0 : index
    %34 = vector.load %arg4[%c2, %c0_19] : memref<8x128xf32, #tpu.memory_space<vmem>>, vector<1x32xf32>
    %35 = vector.broadcast %34 : vector<1x32xf32> to vector<8x32xf32>
    %36 = arith.addf %33, %35 : vector<8x32xf32>
    %cst_20 = arith.constant 0.000000e+00 : f32
    %37 = vector.broadcast %cst_20 : f32 to vector<8x32xf32>
    %38 = arith.cmpf ogt, %36, %37 : vector<8x32xf32>
    %cst_21 = arith.constant 1.000000e-01 : f32
    %39 = vector.broadcast %cst_21 : f32 to vector<8x32xf32>
    %40 = arith.mulf %39, %36 : vector<8x32xf32>
    %41 = arith.select %38, %36, %40 : vector<8x32xi1>, vector<8x32xf32>
    %c64 = arith.constant 64 : index
    %c0_22 = arith.constant 0 : index
    %42 = vector.load %arg3[%c64, %c0_22] : memref<160x128xf32, #tpu.memory_space<vmem>>, vector<32x48xf32>
    %cst_23 = arith.constant dense<0.000000e+00> : vector<8x48xf32>
    %43 = tpu.matmul %41, %42, %cst_23 {dimension_numbers = #tpu.dot_dimension_numbers<[1], [0], [0], [1], [0, 0, 1, 1], [], []>} : vector<8x32xf32>, vector<32x48xf32>, vector<8x48xf32> -> vector<8x48xf32>
    %c96 = arith.constant 96 : index
    %c0_24 = arith.constant 0 : index
    %44 = vector.load %arg3[%c96, %c0_24] : memref<160x128xf32, #tpu.memory_space<vmem>>, vector<32x48xf32>
    %cst_25 = arith.constant dense<0.000000e+00> : vector<8x48xf32>
    %45 = tpu.matmul %1, %44, %cst_25 {dimension_numbers = #tpu.dot_dimension_numbers<[1], [0], [0], [1], [0, 0, 1, 1], [], []>} : vector<8x32xf32>, vector<32x48xf32>, vector<8x48xf32> -> vector<8x48xf32>
    %46 = arith.addf %43, %45 : vector<8x48xf32>
    %c3 = arith.constant 3 : index
    %c0_26 = arith.constant 0 : index
    %47 = vector.load %arg4[%c3, %c0_26] : memref<8x128xf32, #tpu.memory_space<vmem>>, vector<1x48xf32>
    %48 = vector.broadcast %47 : vector<1x48xf32> to vector<8x48xf32>
    %49 = arith.addf %46, %48 : vector<8x48xf32>
    %50 = vector.extract_strided_slice %49 {offsets = [0, 0], sizes = [8, 16], strides = [1, 1]} : vector<8x48xf32> to vector<8x16xf32>
    %51 = math.absf %50 : vector<8x16xf32>
    %cst_27 = arith.constant 0.000000e+00 : f32
    %52 = vector.broadcast %cst_27 : f32 to vector<8x16xf32>
    %53 = arith.subf %52, %51 : vector<8x16xf32>
    %54 = math.exp %53 : vector<8x16xf32>
    %cst_28 = arith.constant 0.000000e+00 : f32
    %55 = vector.broadcast %cst_28 : f32 to vector<8x16xf32>
    %56 = arith.cmpf oge, %50, %55 : vector<8x16xf32>
    %cst_29 = arith.constant 1.000000e+00 : f32
    %57 = vector.broadcast %cst_29 : f32 to vector<8x16xf32>
    %58 = arith.addf %57, %54 : vector<8x16xf32>
    %cst_30 = arith.constant 1.000000e+00 : f32
    %59 = vector.broadcast %cst_30 : f32 to vector<8x16xf32>
    %60 = arith.divf %59, %58 : vector<8x16xf32>
    %cst_31 = arith.constant 1.000000e+00 : f32
    %61 = vector.broadcast %cst_31 : f32 to vector<8x16xf32>
    %62 = arith.addf %61, %54 : vector<8x16xf32>
    %63 = arith.divf %54, %62 : vector<8x16xf32>
    %64 = arith.select %56, %60, %63 : vector<8x16xi1>, vector<8x16xf32>
    %c128 = arith.constant 128 : index
    %c0_32 = arith.constant 0 : index
    %65 = vector.load %arg3[%c128, %c0_32] : memref<160x128xf32, #tpu.memory_space<vmem>>, vector<16x16xf32>
    %cst_33 = arith.constant dense<0.000000e+00> : vector<8x16xf32>
    %66 = tpu.matmul %64, %65, %cst_33 {dimension_numbers = #tpu.dot_dimension_numbers<[1], [0], [0], [1], [0, 0, 1, 1], [], []>} : vector<8x16xf32>, vector<16x16xf32>, vector<8x16xf32> -> vector<8x16xf32>
    %c4 = arith.constant 4 : index
    %c0_34 = arith.constant 0 : index
    %67 = vector.load %arg4[%c4, %c0_34] : memref<8x128xf32, #tpu.memory_space<vmem>>, vector<1x16xf32>
    %68 = vector.broadcast %67 : vector<1x16xf32> to vector<8x16xf32>
    %69 = arith.addf %66, %68 : vector<8x16xf32>
    %cst_35 = arith.constant 0.000000e+00 : f32
    %70 = vector.broadcast %cst_35 : f32 to vector<8x16xf32>
    %71 = arith.cmpf ogt, %69, %70 : vector<8x16xf32>
    %cst_36 = arith.constant 1.000000e-01 : f32
    %72 = vector.broadcast %cst_36 : f32 to vector<8x16xf32>
    %73 = arith.mulf %72, %69 : vector<8x16xf32>
    %74 = arith.select %71, %69, %73 : vector<8x16xi1>, vector<8x16xf32>
    %c144 = arith.constant 144 : index
    %c0_37 = arith.constant 0 : index
    %75 = vector.load %arg3[%c144, %c0_37] : memref<160x128xf32, #tpu.memory_space<vmem>>, vector<16x8xf32>
    %cst_38 = arith.constant dense<0.000000e+00> : vector<8x8xf32>
    %76 = tpu.matmul %74, %75, %cst_38 {dimension_numbers = #tpu.dot_dimension_numbers<[1], [0], [0], [1], [0, 0, 1, 1], [], []>} : vector<8x16xf32>, vector<16x8xf32>, vector<8x8xf32> -> vector<8x8xf32>
    %c5 = arith.constant 5 : index
    %c0_39 = arith.constant 0 : index
    %77 = vector.load %arg4[%c5, %c0_39] : memref<8x128xf32, #tpu.memory_space<vmem>>, vector<1x8xf32>
    %78 = vector.broadcast %77 : vector<1x8xf32> to vector<8x8xf32>
    %79 = arith.addf %76, %78 : vector<8x8xf32>
    %c0_40 = arith.constant 0 : index
    %c0_41 = arith.constant 0 : index
    %80 = vector.load %arg5[%c0_40, %c0_41] : memref<8x128xf32, #tpu.memory_space<vmem>>, vector<8x8xf32>
    tpu.vector_store %arg5[%c0_40, %c0_41], %79 {strides = array<i32>} : memref<8x128xf32, #tpu.memory_space<vmem>>, vector<8x8xf32>,
    %c0_42 = arith.constant 0 : index
    %c8 = arith.constant 8 : index
    %81 = vector.load %arg5[%c0_42, %c8] : memref<8x128xf32, #tpu.memory_space<vmem>>, vector<8x11xf32>
    tpu.vector_store %arg5[%c0_42, %c8], %21 {strides = array<i32>} : memref<8x128xf32, #tpu.memory_space<vmem>>, vector<8x11xf32>,
    %c0_43 = arith.constant 0 : index
    %c19 = arith.constant 19 : index
    %82 = vector.load %arg5[%c0_43, %c19] : memref<8x128xf32, #tpu.memory_space<vmem>>, vector<8x48xf32>
    tpu.vector_store %arg5[%c0_43, %c19], %49 {strides = array<i32>} : memref<8x128xf32, #tpu.memory_space<vmem>>, vector<8x48xf32>,
    %cst_44 = arith.constant 0.000000e+00 : f32
    %83 = vector.broadcast %cst_44 : f32 to vector<8x61xf32>
    %c0_45 = arith.constant 0 : index
    %c67 = arith.constant 67 : index
    %84 = vector.load %arg5[%c0_45, %c67] : memref<8x128xf32, #tpu.memory_space<vmem>>, vector<8x61xf32>
    tpu.vector_store %arg5[%c0_45, %c67], %83 {strides = array<i32>} : memref<8x128xf32, #tpu.memory_space<vmem>>, vector<8x61xf32>,
    return
  }
  func.func @transform_0(%arg0: i32) -> (i32, i32) {
    %c0_i32 = arith.constant 0 : i32
    %c0_i32_0 = arith.constant 0 : i32
    return %arg0, %c0_i32 : i32, i32
  }
  func.func @transform_1(%arg0: i32) -> (i32, i32) {
    %c0_i32 = arith.constant 0 : i32
    %c0_i32_0 = arith.constant 0 : i32
    return %arg0, %c0_i32 : i32, i32
  }
  func.func @transform_2(%arg0: i32) -> (i32, i32) {
    %c0_i32 = arith.constant 0 : i32
    %c0_i32_0 = arith.constant 0 : i32
    %c0_i32_1 = arith.constant 0 : i32
    return %c0_i32, %c0_i32_0 : i32, i32
  }
  func.func @transform_3(%arg0: i32) -> (i32, i32) {
    %c0_i32 = arith.constant 0 : i32
    %c0_i32_0 = arith.constant 0 : i32
    %c0_i32_1 = arith.constant 0 : i32
    return %c0_i32, %c0_i32_0 : i32, i32
  }
  func.func @transform_4(%arg0: i32) -> (i32, i32) {
    %c0_i32 = arith.constant 0 : i32
    %c0_i32_0 = arith.constant 0 : i32
    return %arg0, %c0_i32 : i32, i32
  }
}

</mosaic_0001>

<llo_original>
// kernel: tpu_custom_call.1
$region0: #{tpu_custom_call.1}
  #allocation0 [shape = 'u32[]', space=smem, size = 0x4, offset = 0x4, fixed_abs, tag = 'smem constant byte address 0x4 - core index']
  #allocation1 [shape = 'u32[144,128]{1,0:T(1,128)}', space=vmem, size = 0x12000, scoped, tag = 'internal scratch']
  %s0 = inlined_call_operand.hbm [shape: f32[8,11], index: 0, kind: input, shape index: {}]
  %s1 = inlined_call_operand.hbm [shape: f32[8,32], index: 1, kind: input, shape index: {}]
  %s2 = inlined_call_operand.hbm [shape: f32[160,128], index: 2, kind: input, shape index: {}]
  %s3 = inlined_call_operand.vmem [shape: f32[8,128], index: 3, kind: input, shape index: {}]
  %s4 = inlined_call_operand.hbm [shape: f32[8,128], index: 4, kind: output, shape index: {}]
  %s5 = sld [smem:[#allocation0]]
  $region38: #{tpu_custom_call.1} parent=0
    _
  %s7 = ssub.s32 1, %s5
  %s8 = scalar_select 0, %s7, %s5
  $region1: #{tpu_custom_call.1} parent=0
    #allocation2 [shape = 'u8[4096]{0}', space=vmem, size = 0x1000, scoped, tag = 'input window, operand 0, single buffered']
    #allocation3 [shape = 's32[1]{0}', space=sflag, size = 0x4, scoped, tag = 'scoped memory for tpu_custom_call.1']
    #allocation4 [shape = 's32[1]{0}', space=sflag, size = 0x4, scoped, tag = 'scoped memory for tpu_custom_call.1']
    #allocation5 [shape = 'u8[4096]{0}', space=vmem, size = 0x1000, scoped, tag = 'input window, operand 1, single buffered']
    #allocation6 [shape = 's32[1]{0}', space=sflag, size = 0x4, scoped, tag = 'scoped memory for tpu_custom_call.1']
    #allocation7 [shape = 'u8[81920]{0}', space=vmem, size = 0x14000, scoped, tag = 'input window, operand 2, single buffered']
    #allocation8 [shape = 'u8[4096]{0}', space=vmem, size = 0x1000, scoped, tag = 'output window, operand 0, single buffered']
    %9 = vsyncpa [#allocation3], 0
    %10 = vsyncpa [#allocation6], 0
    %11 = vsyncpa [#allocation4], 0
    // Predicated region
    $region2: #{tpu_custom_call.1} parent=1 // pred_check
      _
    $region3: #{tpu_custom_call.1} parent=1 // pred_check_branch
      %13 = sbr.rel (0) target = $region5
    $region4: #{tpu_custom_call.1} parent=1 // pred_region
      %s15 = ssub.s32 128, 128
      %16 = vsyncadd [#allocation3], %s15
      %s18 = sshll.u32 [#allocation2], 4
      %s19 = int_to_ptr.vmem [resolvable:$true] %s18
      %21 = dma.hbm_to_vmem [thread:$0]  %s0, 128, %s19, [#allocation3]
    $region5: #{tpu_custom_call.1} parent=1 // pred_fallthru
      _
    // Predicated region
    $region6: #{tpu_custom_call.1} parent=1 // pred_check
      _
    $region7: #{tpu_custom_call.1} parent=1 // pred_check_branch
      %23 = sbr.rel (0) target = $region9
    $region8: #{tpu_custom_call.1} parent=1 // pred_region
      %s25 = ssub.s32 128, 128
      %26 = vsyncadd [#allocation6], %s25
      %s28 = sshll.u32 [#allocation5], 4
      %s29 = int_to_ptr.vmem [resolvable:$true] %s28
      %31 = dma.hbm_to_vmem [thread:$0]  %s1, 128, %s29, [#allocation6]
    $region9: #{tpu_custom_call.1} parent=1 // pred_fallthru
      _
    // Predicated region
    $region10: #{tpu_custom_call.1} parent=1 // pred_check
      _
    $region11: #{tpu_custom_call.1} parent=1 // pred_check_branch
      %33 = sbr.rel (0) target = $region13
    $region12: #{tpu_custom_call.1} parent=1 // pred_region
      %s35 = ssub.s32 2560, 2560
      %36 = vsyncadd [#allocation6], %s35
      %s37 = sshll.u32 [#allocation7], 4
      %s38 = int_to_ptr.vmem [resolvable:$true] %s37
      %43 = dma.hbm_to_vmem [thread:$0]  %s2, 2560, %s38, [#allocation6], 128, 128, 8
    $region13: #{tpu_custom_call.1} parent=1 // pred_fallthru
      _
    // Predicated region
    $region14: #{tpu_custom_call.1} parent=1 // pred_check
      _
    $region15: #{tpu_custom_call.1} parent=1 // pred_check_branch
      %45 = sbr.rel (0) target = $region17
    $region16: #{tpu_custom_call.1} parent=1 // pred_region
      _
    $region17: #{tpu_custom_call.1} parent=1 // pred_fallthru
      _
    // Predicated region
    $region18: #{tpu_custom_call.1} parent=1 // pred_check
      _
    $region19: #{tpu_custom_call.1} parent=1 // pred_check_branch
      %47 = sbr.rel (0) target = $region21
    $region20: #{tpu_custom_call.1} parent=1 // pred_region
      %48 = dma.done [#allocation3], 128
    $region21: #{tpu_custom_call.1} parent=1 // pred_fallthru
      _
    // Predicated region
    $region22: #{tpu_custom_call.1} parent=1 // pred_check
      _
    $region23: #{tpu_custom_call.1} parent=1 // pred_check_branch
      %50 = sbr.rel (0) target = $region25
    $region24: #{tpu_custom_call.1} parent=1 // pred_region
      %51 = dma.done [#allocation6], 128
    $region25: #{tpu_custom_call.1} parent=1 // pred_fallthru
      _
    // Predicated region
    $region26: #{tpu_custom_call.1} parent=1 // pred_check
      _
    $region27: #{tpu_custom_call.1} parent=1 // pred_check_branch
      %53 = sbr.rel (0) target = $region29
    $region28: #{tpu_custom_call.1} parent=1 // pred_region
      %54 = dma.done [#allocation6], 2560
    $region29: #{tpu_custom_call.1} parent=1 // pred_fallthru
      _
    %v55 = vld [vmem:[#allocation2] sm:$0xff]
    %v56 = vld [vmem:[#allocation5] sm:$0xff]
    %v57 = vld [vmem:[#allocation7] sm:$0xff]
    %v58 = vld [vmem:[#allocation7 + $0x8] sm:$0x7]
    %v59 = vld [vmem:[%s3] sm:$0x1]
    %v60 = vlaneseq
    %v61 = vshrl.u32 %v60, 7
    %v62 = vsub.s32 0, %v61
    %v63 = vrot.slane %v59, %v62
    %vm64 = vcmask 89088
    %v66 = vsel %vm64, %v55, 0
    %vm68 = vcmask 1042432
    %v70 = vsel %vm68, %v58, 0
    %72 = vmatprep.subr.mxu0 0.0
    %73 = vmatpush1.msra.mxu0 %v57
    %74 = vmatprep.subr.mxu0 0.0
    %75 = vmatpush1.msra.mxu0 %v70
    %76 = vmatprep.subr.mxu0 0.0
    %77 = vmatpush1.msra.mxu0 0.0
    %78 = vmatprep.subr.mxu0 0.0
    %79 = vmatpush1.msra.mxu0 0.0
    %80 = vmatprep.subr.mxu0 0.0
    %81 = vmatpush1.msra.mxu0 0.0
    %82 = vmatprep.subr.mxu0 0.0
    %83 = vmatpush1.msra.mxu0 0.0
    %84 = vmatprep.subr.mxu0 0.0
    %85 = vmatpush1.msra.mxu0 0.0
    %86 = vmatprep.subr.mxu0 0.0
    %87 = vmatpush1.msra.mxu0 0.0
    %88 = vmatprep.subr.mxu0 0.0
    %89 = vmatpush1.msra.mxu0 0.0
    %90 = vmatprep.subr.mxu0 0.0
    %91 = vmatpush1.msra.mxu0 0.0
    %92 = vmatprep.subr.mxu0 0.0
    %93 = vmatpush1.msra.mxu0 0.0
    %94 = vmatprep.subr.mxu0 0.0
    %95 = vmatpush1.msra.mxu0 0.0
    %96 = vmatprep.subr.mxu0 0.0
    %97 = vmatpush1.msra.mxu0 0.0
    %98 = vmatprep.subr.mxu0 0.0
    %99 = vmatpush1.msra.mxu0 0.0
    %100 = vmatprep.subr.mxu0 0.0
    %101 = vmatpush1.msra.mxu0 0.0
    %102 = vmatprep.subr.mxu0 0.0
    %103 = vmatpush1.msra.mxu0 0.0
    %104 = vmatprep.subr.mxu0 0.0
    %105 = vmatpush1.msra.mxu0 0.0
    %106 = vmatprep.subr.mxu0 0.0
    %107 = vmatpush1.msra.mxu0 0.0
    %108 = vmatprep.subr.mxu0 0.0
    %109 = vmatpush1.msra.mxu0 0.0
    %110 = vmatprep.subr.mxu0 0.0
    %111 = vmatpush1.msra.mxu0 0.0
    %112 = vmatprep.subr.mxu0 0.0
    %113 = vmatpush1.msra.mxu0 0.0
    %114 = vmatprep.subr.mxu0 0.0
    %115 = vmatpush1.msra.mxu0 0.0
    %116 = vmatprep.subr.mxu0 0.0
    %117 = vmatpush1.msra.mxu0 0.0
    %118 = vmatprep.subr.mxu0 0.0
    %119 = vmatpush1.msra.mxu0 0.0
    %120 = vmatprep.subr.mxu0 0.0
    %121 = vmatpush1.msra.mxu0 0.0
    %122 = vmatprep.subr.mxu0 0.0
    %123 = vmatpush1.msra.mxu0 0.0
    %124 = vmatprep.subr.mxu0 0.0
    %125 = vmatpush1.msra.mxu0 0.0
    %126 = vmatprep.subr.mxu0 0.0
    %127 = vmatpush1.msra.mxu0 0.0
    %128 = vmatprep.subr.mxu0 0.0
    %129 = vmatpush1.msra.mxu0 0.0
    %130 = vmatprep.subr.mxu0 0.0
    %131 = vmatpush1.msra.mxu0 0.0
    %132 = vmatprep.subr.mxu0 0.0
    %133 = vmatpush1.msra.mxu0 0.0
    %134 = vmatprep.subr.mxu0 0.0
    %135 = vmatpush1.msra.mxu0 0.0
    %136 = vmatprep.mubr.f32.mxu0 0.0
    %137 = vmatmul.mubr.f32.gmra.mrb[0].mxu0 %v66
    %v138 = vpop.f32.mrb[0].mxu0
    %v139 = vadd.f32 %v63, %v138
    %v140 = vpop.f32.mrb[0].mxu0
    %141 = vdwg.mxu0
    %v142 = vand.u32 2147483647, %v139
    %v143 = vsub.f32 0.0, %v142
    %v144 = vmul.f32 %v143, 1.442695
    %v145 = vpow.pop %v144
    %vm146 = vcmp.ge.f32.partialorder %v139, 0.0
    %v147 = vadd.f32 %v145, 1.0
    %v148 = vrcp.pop %v147
    %v149 = vmul.f32 1.0, %v148
    %v150 = vmul.f32 %v145, %v148
    %v151 = vsel %vm146, %v149, %v150
    %v152 = vmul.f32 %v55, %v151
    %v153 = vld [vmem:[#allocation7 + $0x10] sm:$0xff]
    %v154 = vld [vmem:[#allocation7 + $0x18] sm:$0x7]
    %v155 = vld [vmem:[%s3 + $0x1] sm:$0x1]
    %v156 = vlaneseq
    %v157 = vshrl.u32 %v156, 7
    %v158 = vsub.s32 0, %v157
    %v159 = vrot.slane %v155, %v158
    %v161 = vsel %vm64, %v152, 0
    %v164 = vsel %vm68, %v154, 0
    %166 = vmatprep.subr.mxu0 0.0
    %167 = vmatpush1.msra.mxu0 %v153
    %168 = vmatprep.subr.mxu0 0.0
    %169 = vmatpush1.msra.mxu0 %v164
    %170 = vmatprep.subr.mxu0 0.0
    %171 = vmatpush1.msra.mxu0 0.0
    %172 = vmatprep.subr.mxu0 0.0
    %173 = vmatpush1.msra.mxu0 0.0
    %174 = vmatprep.subr.mxu0 0.0
    %175 = vmatpush1.msra.mxu0 0.0
    %176 = vmatprep.subr.mxu0 0.0
    %177 = vmatpush1.msra.mxu0 0.0
    %178 = vmatprep.subr.mxu0 0.0
    %179 = vmatpush1.msra.mxu0 0.0
    %180 = vmatprep.subr.mxu0 0.0
    %181 = vmatpush1.msra.mxu0 0.0
    %182 = vmatprep.subr.mxu0 0.0
    %183 = vmatpush1.msra.mxu0 0.0
    %184 = vmatprep.subr.mxu0 0.0
    %185 = vmatpush1.msra.mxu0 0.0
    %186 = vmatprep.subr.mxu0 0.0
    %187 = vmatpush1.msra.mxu0 0.0
    %188 = vmatprep.subr.mxu0 0.0
    %189 = vmatpush1.msra.mxu0 0.0
    %190 = vmatprep.subr.mxu0 0.0
    %191 = vmatpush1.msra.mxu0 0.0
    %192 = vmatprep.subr.mxu0 0.0
    %193 = vmatpush1.msra.mxu0 0.0
    %194 = vmatprep.subr.mxu0 0.0
    %195 = vmatpush1.msra.mxu0 0.0
    %196 = vmatprep.subr.mxu0 0.0
    %197 = vmatpush1.msra.mxu0 0.0
    %198 = vmatprep.subr.mxu0 0.0
    %199 = vmatpush1.msra.mxu0 0.0
    %200 = vmatprep.subr.mxu0 0.0
    %201 = vmatpush1.msra.mxu0 0.0
    %202 = vmatprep.subr.mxu0 0.0
    %203 = vmatpush1.msra.mxu0 0.0
    %204 = vmatprep.subr.mxu0 0.0
    %205 = vmatpush1.msra.mxu0 0.0
    %206 = vmatprep.subr.mxu0 0.0
    %207 = vmatpush1.msra.mxu0 0.0
    %208 = vmatprep.subr.mxu0 0.0
    %209 = vmatpush1.msra.mxu0 0.0
    %210 = vmatprep.subr.mxu0 0.0
    %211 = vmatpush1.msra.mxu0 0.0
    %212 = vmatprep.subr.mxu0 0.0
    %213 = vmatpush1.msra.mxu0 0.0
    %214 = vmatprep.subr.mxu0 0.0
    %215 = vmatpush1.msra.mxu0 0.0
    %216 = vmatprep.subr.mxu0 0.0
    %217 = vmatpush1.msra.mxu0 0.0
    %218 = vmatprep.subr.mxu0 0.0
    %219 = vmatpush1.msra.mxu0 0.0
    %220 = vmatprep.subr.mxu0 0.0
    %221 = vmatpush1.msra.mxu0 0.0
    %222 = vmatprep.subr.mxu0 0.0
    %223 = vmatpush1.msra.mxu0 0.0
    %224 = vmatprep.subr.mxu0 0.0
    %225 = vmatpush1.msra.mxu0 0.0
    %226 = vmatprep.subr.mxu0 0.0
    %227 = vmatpush1.msra.mxu0 0.0
    %228 = vmatprep.subr.mxu0 0.0
    %229 = vmatpush1.msra.mxu0 0.0
    %230 = vmatprep.mubr.f32.mxu0 0.0
    %231 = vmatmul.mubr.f32.gmra.mrb[0].mxu0 %v161
    %v232 = vpop.f32.mrb[0].mxu0
    %v233 = vadd.f32 %v159, %v232
    %v234 = vpop.f32.mrb[0].mxu0
    %235 = vdwg.mxu0
    %vm236 = vcmp.gt.f32.partialorder %v233, 0.0
    %v237 = vmul.f32 %v233, 0.1
    %v238 = vsel %vm236, %v233, %v237
    %v239 = vld [vmem:[#allocation7 + $0x20] sm:$0xff]
    %v240 = vld [vmem:[#allocation7 + $0x28] sm:$0xff]
    %v241 = vld [vmem:[#allocation7 + $0x30] sm:$0xff]
    %v242 = vld [vmem:[#allocation7 + $0x38] sm:$0xff]
    %v243 = vld [vmem:[%s3 + $0x2] sm:$0x1]
    %v244 = vlaneseq
    %v245 = vshrl.u32 %v244, 7
    %v246 = vsub.s32 0, %v245
    %v247 = vrot.slane %v243, %v246
    %vm248 = vcmask 261120
    %v250 = vsel %vm248, %v238, 0
    %252 = vmatprep.subr.mxu0 0.0
    %253 = vmatpush1.msra.mxu0 %v239
    %254 = vmatprep.subr.mxu0 0.0
    %255 = vmatpush1.msra.mxu0 %v240
    %256 = vmatprep.subr.mxu0 0.0
    %257 = vmatpush1.msra.mxu0 %v241
    %258 = vmatprep.subr.mxu0 0.0
    %259 = vmatpush1.msra.mxu0 %v242
    %260 = vmatprep.subr.mxu0 0.0
    %261 = vmatpush1.msra.mxu0 0.0
    %262 = vmatprep.subr.mxu0 0.0
    %263 = vmatpush1.msra.mxu0 0.0
    %264 = vmatprep.subr.mxu0 0.0
    %265 = vmatpush1.msra.mxu0 0.0
    %266 = vmatprep.subr.mxu0 0.0
    %267 = vmatpush1.msra.mxu0 0.0
    %268 = vmatprep.subr.mxu0 0.0
    %269 = vmatpush1.msra.mxu0 0.0
    %270 = vmatprep.subr.mxu0 0.0
    %271 = vmatpush1.msra.mxu0 0.0
    %272 = vmatprep.subr.mxu0 0.0
    %273 = vmatpush1.msra.mxu0 0.0
    %274 = vmatprep.subr.mxu0 0.0
    %275 = vmatpush1.msra.mxu0 0.0
    %276 = vmatprep.subr.mxu0 0.0
    %277 = vmatpush1.msra.mxu0 0.0
    %278 = vmatprep.subr.mxu0 0.0
    %279 = vmatpush1.msra.mxu0 0.0
    %280 = vmatprep.subr.mxu0 0.0
    %281 = vmatpush1.msra.mxu0 0.0
    %282 = vmatprep.subr.mxu0 0.0
    %283 = vmatpush1.msra.mxu0 0.0
    %284 = vmatprep.subr.mxu0 0.0
    %285 = vmatpush1.msra.mxu0 0.0
    %286 = vmatprep.subr.mxu0 0.0
    %287 = vmatpush1.msra.mxu0 0.0
    %288 = vmatprep.subr.mxu0 0.0
    %289 = vmatpush1.msra.mxu0 0.0
    %290 = vmatprep.subr.mxu0 0.0
    %291 = vmatpush1.msra.mxu0 0.0
    %292 = vmatprep.subr.mxu0 0.0
    %293 = vmatpush1.msra.mxu0 0.0
    %294 = vmatprep.subr.mxu0 0.0
    %295 = vmatpush1.msra.mxu0 0.0
    %296 = vmatprep.subr.mxu0 0.0
    %297 = vmatpush1.msra.mxu0 0.0
    %298 = vmatprep.subr.mxu0 0.0
    %299 = vmatpush1.msra.mxu0 0.0
    %300 = vmatprep.subr.mxu0 0.0
    %301 = vmatpush1.msra.mxu0 0.0
    %302 = vmatprep.subr.mxu0 0.0
    %303 = vmatpush1.msra.mxu0 0.0
    %304 = vmatprep.subr.mxu0 0.0
    %305 = vmatpush1.msra.mxu0 0.0
    %306 = vmatprep.subr.mxu0 0.0
    %307 = vmatpush1.msra.mxu0 0.0
    %308 = vmatprep.subr.mxu0 0.0
    %309 = vmatpush1.msra.mxu0 0.0
    %310 = vmatprep.subr.mxu0 0.0
    %311 = vmatpush1.msra.mxu0 0.0
    %312 = vmatprep.subr.mxu0 0.0
    %313 = vmatpush1.msra.mxu0 0.0
    %314 = vmatprep.subr.mxu0 0.0
    %315 = vmatpush1.msra.mxu0 0.0
    %316 = vmatprep.mubr.f32.mxu0 0.0
    %317 = vmatmul.mubr.f32.gmra.mrb[0].mxu0 %v250
    %v318 = vpop.f32.mrb[0].mxu0
    %v319 = vadd.f32 %v247, %v318
    %v320 = vpop.f32.mrb[0].mxu0
    %321 = vdwg.mxu0
    %vm322 = vcmp.gt.f32.partialorder %v319, 0.0
    %v323 = vmul.f32 %v319, 0.1
    %v324 = vsel %vm322, %v319, %v323
    %v325 = vld [vmem:[#allocation7 + $0x40] sm:$0xff]
    %v326 = vld [vmem:[#allocation7 + $0x48] sm:$0xff]
    %v327 = vld [vmem:[#allocation7 + $0x50] sm:$0xff]
    %v328 = vld [vmem:[#allocation7 + $0x58] sm:$0xff]
    %v329 = vld [vmem:[#allocation7 + $0x60] sm:$0xff]
    %v330 = vld [vmem:[#allocation7 + $0x68] sm:$0xff]
    %v331 = vld [vmem:[#allocation7 + $0x70] sm:$0xff]
    %v332 = vld [vmem:[#allocation7 + $0x78] sm:$0xff]
    %v334 = vsel %vm248, %v56, 0
    %336 = vmatprep.subr.mxu0 0.0
    %337 = vmatpush1.msra.mxu0 %v329
    %338 = vmatprep.subr.mxu0 0.0
    %339 = vmatpush1.msra.mxu0 %v330
    %340 = vmatprep.subr.mxu0 0.0
    %341 = vmatpush1.msra.mxu0 %v331
    %342 = vmatprep.subr.mxu0 0.0
    %343 = vmatpush1.msra.mxu0 %v332
    %344 = vmatprep.subr.mxu0 0.0
    %345 = vmatpush1.msra.mxu0 0.0
    %346 = vmatprep.subr.mxu0 0.0
    %347 = vmatpush1.msra.mxu0 0.0
    %348 = vmatprep.subr.mxu0 0.0
    %349 = vmatpush1.msra.mxu0 0.0
    %350 = vmatprep.subr.mxu0 0.0
    %351 = vmatpush1.msra.mxu0 0.0
    %352 = vmatprep.subr.mxu0 0.0
    %353 = vmatpush1.msra.mxu0 0.0
    %354 = vmatprep.subr.mxu0 0.0
    %355 = vmatpush1.msra.mxu0 0.0
    %356 = vmatprep.subr.mxu0 0.0
    %357 = vmatpush1.msra.mxu0 0.0
    %358 = vmatprep.subr.mxu0 0.0
    %359 = vmatpush1.msra.mxu0 0.0
    %360 = vmatprep.subr.mxu0 0.0
    %361 = vmatpush1.msra.mxu0 0.0
    %362 = vmatprep.subr.mxu0 0.0
    %363 = vmatpush1.msra.mxu0 0.0
    %364 = vmatprep.subr.mxu0 0.0
    %365 = vmatpush1.msra.mxu0 0.0
    %366 = vmatprep.subr.mxu0 0.0
    %367 = vmatpush1.msra.mxu0 0.0
    %368 = vmatprep.subr.mxu0 0.0
    %369 = vmatpush1.msra.mxu0 0.0
    %370 = vmatprep.subr.mxu0 0.0
    %371 = vmatpush1.msra.mxu0 0.0
    %372 = vmatprep.subr.mxu0 0.0
    %373 = vmatpush1.msra.mxu0 0.0
    %374 = vmatprep.subr.mxu0 0.0
    %375 = vmatpush1.msra.mxu0 0.0
    %376 = vmatprep.subr.mxu0 0.0
    %377 = vmatpush1.msra.mxu0 0.0
    %378 = vmatprep.subr.mxu0 0.0
    %379 = vmatpush1.msra.mxu0 0.0
    %380 = vmatprep.subr.mxu0 0.0
    %381 = vmatpush1.msra.mxu0 0.0
    %382 = vmatprep.subr.mxu0 0.0
    %383 = vmatpush1.msra.mxu0 0.0
    %384 = vmatprep.subr.mxu0 0.0
    %385 = vmatpush1.msra.mxu0 0.0
    %386 = vmatprep.subr.mxu0 0.0
    %387 = vmatpush1.msra.mxu0 0.0
    %388 = vmatprep.subr.mxu0 0.0
    %389 = vmatpush1.msra.mxu0 0.0
    %390 = vmatprep.subr.mxu0 0.0
    %391 = vmatpush1.msra.mxu0 0.0
    %392 = vmatprep.subr.mxu0 0.0
    %393 = vmatpush1.msra.mxu0 0.0
    %394 = vmatprep.subr.mxu0 0.0
    %395 = vmatpush1.msra.mxu0 0.0
    %396 = vmatprep.subr.mxu0 0.0
    %397 = vmatpush1.msra.mxu0 0.0
    %398 = vmatprep.subr.mxu0 0.0
    %399 = vmatpush1.msra.mxu0 0.0
    %400 = vmatprep.mubr.f32.mxu0 0.0
    %401 = vmatmul.mubr.f32.gmra.mrb[0].mxu0 %v334
    %v402 = vpop.f32.mrb[0].mxu0
    %v403 = vadd.f32 0.0, %v402
    %v404 = vpop.f32.mrb[0].mxu0
    %405 = vdwg.mxu0
    %v407 = vsel %vm248, %v324, 0
    %409 = vmatprep.subr.mxu0 0.0
    %410 = vmatpush1.msra.mxu0 %v325
    %411 = vmatprep.subr.mxu0 0.0
    %412 = vmatpush1.msra.mxu0 %v326
    %413 = vmatprep.subr.mxu0 0.0
    %414 = vmatpush1.msra.mxu0 %v327
    %415 = vmatprep.subr.mxu0 0.0
    %416 = vmatpush1.msra.mxu0 %v328
    %417 = vmatprep.subr.mxu0 0.0
    %418 = vmatpush1.msra.mxu0 0.0
    %419 = vmatprep.subr.mxu0 0.0
    %420 = vmatpush1.msra.mxu0 0.0
    %421 = vmatprep.subr.mxu0 0.0
    %422 = vmatpush1.msra.mxu0 0.0
    %423 = vmatprep.subr.mxu0 0.0
    %424 = vmatpush1.msra.mxu0 0.0
    %425 = vmatprep.subr.mxu0 0.0
    %426 = vmatpush1.msra.mxu0 0.0
    %427 = vmatprep.subr.mxu0 0.0
    %428 = vmatpush1.msra.mxu0 0.0
    %429 = vmatprep.subr.mxu0 0.0
    %430 = vmatpush1.msra.mxu0 0.0
    %431 = vmatprep.subr.mxu0 0.0
    %432 = vmatpush1.msra.mxu0 0.0
    %433 = vmatprep.subr.mxu0 0.0
    %434 = vmatpush1.msra.mxu0 0.0
    %435 = vmatprep.subr.mxu0 0.0
    %436 = vmatpush1.msra.mxu0 0.0
    %437 = vmatprep.subr.mxu0 0.0
    %438 = vmatpush1.msra.mxu0 0.0
    %439 = vmatprep.subr.mxu0 0.0
    %440 = vmatpush1.msra.mxu0 0.0
    %441 = vmatprep.subr.mxu0 0.0
    %442 = vmatpush1.msra.mxu0 0.0
    %443 = vmatprep.subr.mxu0 0.0
    %444 = vmatpush1.msra.mxu0 0.0
    %445 = vmatprep.subr.mxu0 0.0
    %446 = vmatpush1.msra.mxu0 0.0
    %447 = vmatprep.subr.mxu0 0.0
    %448 = vmatpush1.msra.mxu0 0.0
    %449 = vmatprep.subr.mxu0 0.0
    %450 = vmatpush1.msra.mxu0 0.0
    %451 = vmatprep.subr.mxu0 0.0
    %452 = vmatpush1.msra.mxu0 0.0
    %453 = vmatprep.subr.mxu0 0.0
    %454 = vmatpush1.msra.mxu0 0.0
    %455 = vmatprep.subr.mxu0 0.0
    %456 = vmatpush1.msra.mxu0 0.0
    %457 = vmatprep.subr.mxu0 0.0
    %458 = vmatpush1.msra.mxu0 0.0
    %459 = vmatprep.subr.mxu0 0.0
    %460 = vmatpush1.msra.mxu0 0.0
    %461 = vmatprep.subr.mxu0 0.0
    %462 = vmatpush1.msra.mxu0 0.0
    %463 = vmatprep.subr.mxu0 0.0
    %464 = vmatpush1.msra.mxu0 0.0
    %465 = vmatprep.subr.mxu0 0.0
    %466 = vmatpush1.msra.mxu0 0.0
    %467 = vmatprep.subr.mxu0 0.0
    %468 = vmatpush1.msra.mxu0 0.0
    %469 = vmatprep.subr.mxu0 0.0
    %470 = vmatpush1.msra.mxu0 0.0
    %471 = vmatprep.subr.mxu0 0.0
    %472 = vmatpush1.msra.mxu0 0.0
    %473 = vmatprep.mubr.f32.mxu0 0.0
    %474 = vmatmul.mubr.f32.gmra.mrb[0].mxu0 %v407
    %v475 = vpop.f32.mrb[0].mxu0
    %v476 = vadd.f32 %v403, %v475
    %v477 = vpop.f32.mrb[0].mxu0
    %478 = vdwg.mxu0
    %v479 = vld [vmem:[%s3 + $0x3] sm:$0x1]
    %v480 = vlaneseq
    %v481 = vshrl.u32 %v480, 7
    %v482 = vsub.s32 0, %v481
    %v483 = vrot.slane %v479, %v482
    %v484 = vadd.f32 %v476, %v483
    %v485 = vand.u32 2147483647, %v484
    %v486 = vsub.f32 0.0, %v485
    %v487 = vmul.f32 %v486, 1.442695
    %v488 = vpow.pop %v487
    %vm489 = vcmp.ge.f32.partialorder %v484, 0.0
    %v490 = vadd.f32 %v488, 1.0
    %v491 = vrcp.pop %v490
    %v492 = vmul.f32 1.0, %v491
    %v493 = vmul.f32 %v488, %v491
    %v494 = vsel %vm489, %v492, %v493
    %v495 = vld [vmem:[#allocation7 + $0x80] sm:$0xff]
    %v496 = vld [vmem:[#allocation7 + $0x88] sm:$0xff]
    %v497 = vld [vmem:[%s3 + $0x4] sm:$0x1]
    %v498 = vlaneseq
    %v499 = vshrl.u32 %v498, 7
    %v500 = vsub.s32 0, %v499
    %v501 = vrot.slane %v497, %v500
    %vm502 = vcmask 130048
    %v504 = vsel %vm502, %v494, 0
    %506 = vmatprep.subr.mxu0 0.0
    %507 = vmatpush1.msra.mxu0 %v495
    %508 = vmatprep.subr.mxu0 0.0
    %509 = vmatpush1.msra.mxu0 %v496
    %510 = vmatprep.subr.mxu0 0.0
    %511 = vmatpush1.msra.mxu0 0.0
    %512 = vmatprep.subr.mxu0 0.0
    %513 = vmatpush1.msra.mxu0 0.0
    %514 = vmatprep.subr.mxu0 0.0
    %515 = vmatpush1.msra.mxu0 0.0
    %516 = vmatprep.subr.mxu0 0.0
    %517 = vmatpush1.msra.mxu0 0.0
    %518 = vmatprep.subr.mxu0 0.0
    %519 = vmatpush1.msra.mxu0 0.0
    %520 = vmatprep.subr.mxu0 0.0
    %521 = vmatpush1.msra.mxu0 0.0
    %522 = vmatprep.subr.mxu0 0.0
    %523 = vmatpush1.msra.mxu0 0.0
    %524 = vmatprep.subr.mxu0 0.0
    %525 = vmatpush1.msra.mxu0 0.0
    %526 = vmatprep.subr.mxu0 0.0
    %527 = vmatpush1.msra.mxu0 0.0
    %528 = vmatprep.subr.mxu0 0.0
    %529 = vmatpush1.msra.mxu0 0.0
    %530 = vmatprep.subr.mxu0 0.0
    %531 = vmatpush1.msra.mxu0 0.0
    %532 = vmatprep.subr.mxu0 0.0
    %533 = vmatpush1.msra.mxu0 0.0
    %534 = vmatprep.subr.mxu0 0.0
    %535 = vmatpush1.msra.mxu0 0.0
    %536 = vmatprep.subr.mxu0 0.0
    %537 = vmatpush1.msra.mxu0 0.0
    %538 = vmatprep.subr.mxu0 0.0
    %539 = vmatpush1.msra.mxu0 0.0
    %540 = vmatprep.subr.mxu0 0.0
    %541 = vmatpush1.msra.mxu0 0.0
    %542 = vmatprep.subr.mxu0 0.0
    %543 = vmatpush1.msra.mxu0 0.0
    %544 = vmatprep.subr.mxu0 0.0
    %545 = vmatpush1.msra.mxu0 0.0
    %546 = vmatprep.subr.mxu0 0.0
    %547 = vmatpush1.msra.mxu0 0.0
    %548 = vmatprep.subr.mxu0 0.0
    %549 = vmatpush1.msra.mxu0 0.0
    %550 = vmatprep.subr.mxu0 0.0
    %551 = vmatpush1.msra.mxu0 0.0
    %552 = vmatprep.subr.mxu0 0.0
    %553 = vmatpush1.msra.mxu0 0.0
    %554 = vmatprep.subr.mxu0 0.0
    %555 = vmatpush1.msra.mxu0 0.0
    %556 = vmatprep.subr.mxu0 0.0
    %557 = vmatpush1.msra.mxu0 0.0
    %558 = vmatprep.subr.mxu0 0.0
    %559 = vmatpush1.msra.mxu0 0.0
    %560 = vmatprep.subr.mxu0 0.0
    %561 = vmatpush1.msra.mxu0 0.0
    %562 = vmatprep.subr.mxu0 0.0
    %563 = vmatpush1.msra.mxu0 0.0
    %564 = vmatprep.subr.mxu0 0.0
    %565 = vmatpush1.msra.mxu0 0.0
    %566 = vmatprep.subr.mxu0 0.0
    %567 = vmatpush1.msra.mxu0 0.0
    %568 = vmatprep.subr.mxu0 0.0
    %569 = vmatpush1.msra.mxu0 0.0
    %570 = vmatprep.mubr.f32.mxu0 0.0
    %571 = vmatmul.mubr.f32.gmra.mrb[0].mxu0 %v504
    %v572 = vpop.f32.mrb[0].mxu0
    %v573 = vadd.f32 %v501, %v572
    %v574 = vpop.f32.mrb[0].mxu0
    %575 = vdwg.mxu0
    %vm576 = vcmp.gt.f32.partialorder %v573, 0.0
    %v577 = vmul.f32 %v573, 0.1
    %v578 = vsel %vm576, %v573, %v577
    %v579 = vld [vmem:[#allocation7 + $0x90] sm:$0xff]
    %v580 = vld [vmem:[#allocation7 + $0x98] sm:$0xff]
    %v581 = vld [vmem:[%s3 + $0x5] sm:$0x1]
    %v582 = vlaneseq
    %v583 = vshrl.u32 %v582, 7
    %v584 = vsub.s32 0, %v583
    %v585 = vrot.slane %v581, %v584
    %v587 = vsel %vm502, %v578, 0
    %589 = vmatprep.subr.mxu0 0.0
    %590 = vmatpush1.msra.mxu0 %v579
    %591 = vmatprep.subr.mxu0 0.0
    %592 = vmatpush1.msra.mxu0 %v580
    %593 = vmatprep.subr.mxu0 0.0
    %594 = vmatpush1.msra.mxu0 0.0
    %595 = vmatprep.subr.mxu0 0.0
    %596 = vmatpush1.msra.mxu0 0.0
    %597 = vmatprep.subr.mxu0 0.0
    %598 = vmatpush1.msra.mxu0 0.0
    %599 = vmatprep.subr.mxu0 0.0
    %600 = vmatpush1.msra.mxu0 0.0
    %601 = vmatprep.subr.mxu0 0.0
    %602 = vmatpush1.msra.mxu0 0.0
    %603 = vmatprep.subr.mxu0 0.0
    %604 = vmatpush1.msra.mxu0 0.0
    %605 = vmatprep.subr.mxu0 0.0
    %606 = vmatpush1.msra.mxu0 0.0
    %607 = vmatprep.subr.mxu0 0.0
    %608 = vmatpush1.msra.mxu0 0.0
    %609 = vmatprep.subr.mxu0 0.0
    %610 = vmatpush1.msra.mxu0 0.0
    %611 = vmatprep.subr.mxu0 0.0
    %612 = vmatpush1.msra.mxu0 0.0
    %613 = vmatprep.subr.mxu0 0.0
    %614 = vmatpush1.msra.mxu0 0.0
    %615 = vmatprep.subr.mxu0 0.0
    %616 = vmatpush1.msra.mxu0 0.0
    %617 = vmatprep.subr.mxu0 0.0
    %618 = vmatpush1.msra.mxu0 0.0
    %619 = vmatprep.subr.mxu0 0.0
    %620 = vmatpush1.msra.mxu0 0.0
    %621 = vmatprep.subr.mxu0 0.0
    %622 = vmatpush1.msra.mxu0 0.0
    %623 = vmatprep.subr.mxu0 0.0
    %624 = vmatpush1.msra.mxu0 0.0
    %625 = vmatprep.subr.mxu0 0.0
    %626 = vmatpush1.msra.mxu0 0.0
    %627 = vmatprep.subr.mxu0 0.0
    %628 = vmatpush1.msra.mxu0 0.0
    %629 = vmatprep.subr.mxu0 0.0
    %630 = vmatpush1.msra.mxu0 0.0
    %631 = vmatprep.subr.mxu0 0.0
    %632 = vmatpush1.msra.mxu0 0.0
    %633 = vmatprep.subr.mxu0 0.0
    %634 = vmatpush1.msra.mxu0 0.0
    %635 = vmatprep.subr.mxu0 0.0
    %636 = vmatpush1.msra.mxu0 0.0
    %637 = vmatprep.subr.mxu0 0.0
    %638 = vmatpush1.msra.mxu0 0.0
    %639 = vmatprep.subr.mxu0 0.0
    %640 = vmatpush1.msra.mxu0 0.0
    %641 = vmatprep.subr.mxu0 0.0
    %642 = vmatpush1.msra.mxu0 0.0
    %643 = vmatprep.subr.mxu0 0.0
    %644 = vmatpush1.msra.mxu0 0.0
    %645 = vmatprep.subr.mxu0 0.0
    %646 = vmatpush1.msra.mxu0 0.0
    %647 = vmatprep.subr.mxu0 0.0
    %648 = vmatpush1.msra.mxu0 0.0
    %649 = vmatprep.subr.mxu0 0.0
    %650 = vmatpush1.msra.mxu0 0.0
    %651 = vmatprep.subr.mxu0 0.0
    %652 = vmatpush1.msra.mxu0 0.0
    %653 = vmatprep.mubr.f32.mxu0 0.0
    %654 = vmatmul.mubr.f32.gmra.mrb[0].mxu0 %v587
    %v655 = vpop.f32.mrb[0].mxu0
    %v656 = vadd.f32 %v585, %v655
    %v657 = vpop.f32.mrb[0].mxu0
    %658 = vdwg.mxu0
    %vm659 = vcmask 64512
    %660 = vst.msk [vmem:[#allocation8] sm:$0xff] %vm659, %v656
    %661 = vrot.lane.b32.xlu0 %v152, 8
    %v662 = vpop.permute.xlu0 %661
    %vm664 = vcmask 154688
    %665 = vst.msk [vmem:[#allocation8] sm:$0xff] %vm664, %v662
    %667 = vrot.lane.b32.xlu0 %v484, 19
    %v668 = vpop.permute.xlu0 %667
    %vm670 = vcmask 547992
    %671 = vst.msk [vmem:[#allocation8] sm:$0xff] %vm670, %v668
    %vm672 = vcmask 1048088
    %673 = vst.msk [vmem:[#allocation8] sm:$0xff] %vm672, 0.0
    // Predicated region
    $region30: #{tpu_custom_call.1} parent=1 // pred_check
      _
    $region31: #{tpu_custom_call.1} parent=1 // pred_check_branch
      %675 = sbr.rel (0) target = $region33
    $region32: #{tpu_custom_call.1} parent=1 // pred_region
      %s677 = ssub.s32 128, 128
      %678 = vsyncadd [#allocation4], %s677
      %s680 = sshll.u32 [#allocation8], 4
      %s681 = int_to_ptr.vmem [resolvable:$true] %s680
      %683 = dma.vmem_to_hbm [thread:$0]  %s681, 128, %s4, [#allocation4]
    $region33: #{tpu_custom_call.1} parent=1 // pred_fallthru
      _
    // Predicated region
    $region34: #{tpu_custom_call.1} parent=1 // pred_check
      _
    $region35: #{tpu_custom_call.1} parent=1 // pred_check_branch
      %685 = sbr.rel (0) target = $region37
    $region36: #{tpu_custom_call.1} parent=1 // pred_region
      %686 = dma.done [#allocation4], 128
    $region37: #{tpu_custom_call.1} parent=1 // pred_fallthru
      _
    %687 = vsyncpa [#allocation3], 1
    %688 = vsyncpa [#allocation6], 1
    %689 = vsyncpa [#allocation4], 1

</llo_original>
